<compile_context>
chip_gen: v7x
topology: tpu7x:2x2x1
jax: 0.10.0
libtpu: 0.0.40
codegen_flags: <defaults>
</compile_context>

<pallas_src>
import jax
import jax.numpy as jnp
from jax.experimental import pallas as pl
from jax.experimental.pallas import tpu as pltpu


# ----------------------------------------------------------------------------
# Kernel
# ----------------------------------------------------------------------------
def _critic_kernel(state_ref, action_ref, w1s_ref, w1a_ref, b1_ref,
                   w2_ref, b2_ref, w3_ref, b3_ref, out_ref):
    """One grid step = one batch tile.  All three layers of every ensemble
    member are fused:
      layer 1: shared input -> lane-packed hidden (bb, n_nets*128)
      layer 2: block-diagonal (n_nets*128, n_nets*128)
      layer 3: block-diagonal, columns zero-padded to a lane-dense multiple
               of 128 -> single full-tile store.
    Total: 3 matmuls (4 MXU pushes because W1 is split), 2 ReLUs, 1 store.
    """
    cdt = w1s_ref.dtype  # MXU operand dtype (f32, or bf16 when use_bf16=True)

    x_s = state_ref[...].astype(cdt)
    x_a = action_ref[...].astype(cdt)

    # Layer 1 (all nets at once; sa @ W1 == state @ W1[:S] + action @ W1[S:]).
    h = (jnp.dot(x_s, w1s_ref[...], preferred_element_type=jnp.float32)
         + jnp.dot(x_a, w1a_ref[...], preferred_element_type=jnp.float32)
         + b1_ref[...])
    h = jnp.maximum(h, 0.0)                                   # (bb, n_nets*128)

    # Layer 2 (block-diagonal over nets).
    h = jnp.dot(h.astype(cdt), w2_ref[...],
                preferred_element_type=jnp.float32) + b2_ref[...]
    h = jnp.maximum(h, 0.0)                                   # (bb, n_nets*128)

    # Layer 3 (block-diagonal, already lane-packed + lane-dense padded).
    out_ref[...] = (jnp.dot(h.astype(cdt), w3_ref[...],
                            preferred_element_type=jnp.float32)
                    + b3_ref[...])                            # (bb, out_pad)


# ----------------------------------------------------------------------------
# Parameter packing (wrapper side, one-time cost)
# ----------------------------------------------------------------------------
def _round_up(x, m):
    return ((x + m - 1) // m) * m


def _block_diag(blocks):
    n = len(blocks)
    r, c = blocks[0].shape
    out = jnp.zeros((n * r, n * c), blocks[0].dtype)
    for i, b in enumerate(blocks):
        out = out.at[i * r:(i + 1) * r, i * c:(i + 1) * c].set(b)
    return out


def pack_critic_params(params, state_dim, *, use_bf16=False):
    """Pack per-net params into the fused / block-diagonal kernel layout."""
    w1, b1, w2, b2, w3, b3 = (params[k] for k in ("w1", "b1", "w2", "b2", "w3", "b3"))
    n_nets, in_dim, hidden = w1.shape
    nq = w3.shape[-1]
    S = state_dim
    A = in_dim - S

    # Layer 1: (in_dim, n_nets*hidden); columns [i*h:(i+1)*h] belong to net i.
    w1p = jnp.transpose(w1, (1, 0, 2)).reshape(in_dim, n_nets * hidden)
    w1s, w1a = w1p[:S], w1p[S:]
    b1p = b1.reshape(1, n_nets * hidden)

    # Layers 2/3: block-diagonal so the ensemble is one matmul each.
    w2bd = _block_diag([w2[i] for i in range(n_nets)])
    b2p = b2.reshape(1, n_nets * hidden)

    out_dim = n_nets * nq
    out_pad = _round_up(out_dim, 128)                  # lane-dense output
    w3bd = _block_diag([w3[i] for i in range(n_nets)])
    w3bd = jnp.pad(w3bd, ((0, 0), (0, out_pad - out_dim)))
    b3p = jnp.pad(b3.reshape(1, out_dim), ((0, 0), (0, out_pad - out_dim)))

    wdt = jnp.bfloat16 if use_bf16 else jnp.float32
    packed = dict(
        w1s=w1s.astype(wdt), w1a=w1a.astype(wdt), b1=b1p.astype(jnp.float32),
        w2=w2bd.astype(wdt), b2=b2p.astype(jnp.float32),
        w3=w3bd.astype(wdt), b3=b3p.astype(jnp.float32),
    )
    meta = dict(n_nets=n_nets, nq=nq, hidden=hidden, state_dim=S,
                action_dim=A, out_dim=out_dim, out_pad=out_pad)
    return packed, meta


# ----------------------------------------------------------------------------
# Forward wrapper
# ----------------------------------------------------------------------------
def critic_forward(state, action, packed, meta, *, block_b=512):
    """Returns quantiles of shape (B, n_nets, n_quantiles), matching PyTorch."""
    S, A = meta["state_dim"], meta["action_dim"]
    n_nets, nq, hidden = meta["n_nets"], meta["nq"], meta["hidden"]
    out_dim, out_pad = meta["out_dim"], meta["out_pad"]
    nh = n_nets * hidden

    state = state.astype(jnp.float32)
    action = action.astype(jnp.float32)
    B = state.shape[0]
    assert state.shape[1] == S and action.shape[1] == A, (state.shape, action.shape)

    # Batch tiling: single full-batch block when small; otherwise pad B up to a
    # multiple of block_b so the parallel grid never collapses to one step.
    if B <= block_b:
        bb, B_pad = B, B
    else:
        bb = block_b
        B_pad = _round_up(B, bb)
    if B_pad != B:
        pad = ((0, B_pad - B), (0, 0))
        state = jnp.pad(state, pad)
        action = jnp.pad(action, pad)
    grid = (B_pad // bb,)

    out = pl.pallas_call(
        _critic_kernel,
        out_shape=jax.ShapeDtypeStruct((B_pad, out_pad), jnp.float32),
        grid=grid,
        in_specs=[
            pl.BlockSpec((bb, S), lambda i: (i, 0)),        # state tile
            pl.BlockSpec((bb, A), lambda i: (i, 0)),        # action tile
            pl.BlockSpec((S, nh), lambda i: (0, 0)),        # W1 state rows   (resident)
            pl.BlockSpec((A, nh), lambda i: (0, 0)),        # W1 action rows  (resident)
            pl.BlockSpec((1, nh), lambda i: (0, 0)),        # b1
            pl.BlockSpec((nh, nh), lambda i: (0, 0)),       # W2 block-diag   (resident)
            pl.BlockSpec((1, nh), lambda i: (0, 0)),        # b2
            pl.BlockSpec((nh, out_pad), lambda i: (0, 0)),  # W3 block-diag   (resident)
            pl.BlockSpec((1, out_pad), lambda i: (0, 0)),   # b3
        ],
        out_specs=pl.BlockSpec((bb, out_pad), lambda i: (i, 0)),
        compiler_params=pltpu.CompilerParams(
            dimension_semantics=("parallel",)),
    )(state, action, packed["w1s"], packed["w1a"], packed["b1"],
      packed["w2"], packed["b2"], packed["w3"], packed["b3"])

    # Drop batch padding and lane padding, then split nets.
    return out[:B, :out_dim].reshape(B, n_nets, nq)


# ----------------------------------------------------------------------------
# Init + reference (for self-test)
# ----------------------------------------------------------------------------
def init_critic_params(key, state_dim, action_dim, n_quantiles, n_nets, hidden=128):
    """Deterministic init mimicking nn.Linear default (U(-1/sqrt(fan_in), +))."""
    in_dim = state_dim + action_dim
    ks = jax.random.split(key, 3)

    def lin(k, n, fan_in, fan_out):
        bound = 1.0 / jnp.sqrt(jnp.float32(fan_in))
        kw, kb = jax.random.split(k)
        w = jax.random.uniform(kw, (n, fan_in, fan_out), jnp.float32, -bound, bound)
        b = jax.random.uniform(kb, (n, fan_out), jnp.float32, -bound, bound)
        return w, b

    w1, b1 = lin(ks[0], n_nets, in_dim, hidden)
    w2, b2 = lin(ks[1], n_nets, hidden, hidden)
    w3, b3 = lin(ks[2], n_nets, hidden, n_quantiles)
    return dict(w1=w1, b1=b1, w2=w2, b2=b2, w3=w3, b3=b3)


def _reference_forward(state, action, params):
    sa = jnp.concatenate([state, action], axis=1).astype(jnp.float32)
    outs = []
    for i in range(params["w1"].shape[0]):
        h = jnp.maximum(sa @ params["w1"][i] + params["b1"][i], 0.0)
        h = jnp.maximum(h @ params["w2"][i] + params["b2"][i], 0.0)
        outs.append(h @ params["w3"][i] + params["b3"][i])
    return jnp.stack(outs, axis=1)


if __name__ == "__main__":
    # Small shapes consistent with the module: state_dim=16, action_dim=4,
    # n_quantiles=25 (typical TQC), n_nets=3, batch=2.
    state_dim, action_dim, n_quantiles, n_nets, batch = 16, 4, 25, 3, 2

    key = jax.random.PRNGKey(0)
    k_params, k_state, k_action = jax.random.split(key, 3)

    params = init_critic_params(k_params, state_dim, action_dim, n_quantiles, n_nets)
    # use_bf16=True is the recommended setting on v6e/v7x (halves weight DMA,
    # bf16-native MXU); kept False here so the 1e-4 reference check holds.
    packed, meta = pack_critic_params(params, state_dim, use_bf16=False)

    state = jax.random.normal(k_state, (batch, state_dim), jnp.float32)
    action = jax.random.normal(k_action, (batch, action_dim), jnp.float32)

    quantiles = jax.block_until_ready(critic_forward(state, action, packed, meta))
    assert quantiles.shape == (batch, n_nets, n_quantiles), quantiles.shape

    ref = _reference_forward(state, action, params)
    assert jnp.allclose(quantiles, ref, atol=1e-4, rtol=1e-4), "mismatch vs reference"

    print("KERNEL_OK")
</pallas_src>

<mosaic_0001>
module attributes {stable_mosaic.version = 11 : i64} {
  func.func @_critic_kernel(%arg0: i32, %arg1: memref<2x16xf32, #tpu.memory_space<vmem>>, %arg2: memref<2x4xf32, #tpu.memory_space<vmem>>, %arg3: memref<16x384xf32, #tpu.memory_space<vmem>>, %arg4: memref<4x384xf32, #tpu.memory_space<vmem>>, %arg5: memref<1x384xf32, #tpu.memory_space<vmem>>, %arg6: memref<384x384xf32, #tpu.memory_space<vmem>>, %arg7: memref<1x384xf32, #tpu.memory_space<vmem>>, %arg8: memref<384x128xf32, #tpu.memory_space<vmem>>, %arg9: memref<1x128xf32, #tpu.memory_space<vmem>>, %arg10: memref<2x128xf32, #tpu.memory_space<vmem>>) attributes {dimension_semantics = [#tpu.dimension_semantics<parallel>], iteration_bounds = array<i64: 1>, scalar_prefetch = 0 : i64, scratch_operands = 0 : i64, tpu.core_type = #tpu.core_type<tc>, window_params = [{transform_indices = @transform_0, window_bounds = array<i64: 2, 16>}, {transform_indices = @transform_1, window_bounds = array<i64: 2, 4>}, {pipeline_mode = #tpu.pipeline_mode<synchronous>, transform_indices = @transform_2, window_bounds = array<i64: 16, 384>}, {pipeline_mode = #tpu.pipeline_mode<synchronous>, transform_indices = @transform_3, window_bounds = array<i64: 4, 384>}, {pipeline_mode = #tpu.pipeline_mode<synchronous>, transform_indices = @transform_4, window_bounds = array<i64: 1, 384>}, {pipeline_mode = #tpu.pipeline_mode<synchronous>, transform_indices = @transform_5, window_bounds = array<i64: 384, 384>}, {pipeline_mode = #tpu.pipeline_mode<synchronous>, transform_indices = @transform_6, window_bounds = array<i64: 1, 384>}, {pipeline_mode = #tpu.pipeline_mode<synchronous>, transform_indices = @transform_7, window_bounds = array<i64: 384, 128>}, {pipeline_mode = #tpu.pipeline_mode<synchronous>, transform_indices = @transform_8, window_bounds = array<i64: 1, 128>}, {transform_indices = @transform_9, window_bounds = array<i64: 2, 128>}]} {
    %c0 = arith.constant 0 : index
    %c0_0 = arith.constant 0 : index
    %0 = vector.load %arg1[%c0, %c0_0] : memref<2x16xf32, #tpu.memory_space<vmem>>, vector<2x16xf32>
    %c0_1 = arith.constant 0 : index
    %c0_2 = arith.constant 0 : index
    %1 = vector.load %arg2[%c0_1, %c0_2] : memref<2x4xf32, #tpu.memory_space<vmem>>, vector<2x4xf32>
    %c0_3 = arith.constant 0 : index
    %c0_4 = arith.constant 0 : index
    %2 = vector.load %arg3[%c0_3, %c0_4] : memref<16x384xf32, #tpu.memory_space<vmem>>, vector<16x384xf32>
    %cst = arith.constant dense<0.000000e+00> : vector<2x384xf32>
    %3 = tpu.matmul %0, %2, %cst {dimension_numbers = #tpu.dot_dimension_numbers<[1], [0], [0], [1], [0, 0, 1, 1], [], []>} : vector<2x16xf32>, vector<16x384xf32>, vector<2x384xf32> -> vector<2x384xf32>
    %c0_5 = arith.constant 0 : index
    %c0_6 = arith.constant 0 : index
    %4 = vector.load %arg4[%c0_5, %c0_6] : memref<4x384xf32, #tpu.memory_space<vmem>>, vector<4x384xf32>
    %cst_7 = arith.constant dense<0.000000e+00> : vector<2x384xf32>
    %5 = tpu.matmul %1, %4, %cst_7 {dimension_numbers = #tpu.dot_dimension_numbers<[1], [0], [0], [1], [0, 0, 1, 1], [], []>} : vector<2x4xf32>, vector<4x384xf32>, vector<2x384xf32> -> vector<2x384xf32>
    %6 = arith.addf %3, %5 : vector<2x384xf32>
    %c0_8 = arith.constant 0 : index
    %c0_9 = arith.constant 0 : index
    %7 = vector.load %arg5[%c0_8, %c0_9] : memref<1x384xf32, #tpu.memory_space<vmem>>, vector<1x384xf32>
    %8 = vector.broadcast %7 : vector<1x384xf32> to vector<2x384xf32>
    %9 = arith.addf %6, %8 : vector<2x384xf32>
    %cst_10 = arith.constant 0.000000e+00 : f32
    %10 = vector.broadcast %cst_10 : f32 to vector<2x384xf32>
    %11 = arith.maximumf %9, %10 : vector<2x384xf32>
    %c0_11 = arith.constant 0 : index
    %c0_12 = arith.constant 0 : index
    %12 = vector.load %arg6[%c0_11, %c0_12] : memref<384x384xf32, #tpu.memory_space<vmem>>, vector<384x384xf32>
    %cst_13 = arith.constant dense<0.000000e+00> : vector<2x384xf32>
    %13 = tpu.matmul %11, %12, %cst_13 {dimension_numbers = #tpu.dot_dimension_numbers<[1], [0], [0], [1], [0, 0, 1, 1], [], []>} : vector<2x384xf32>, vector<384x384xf32>, vector<2x384xf32> -> vector<2x384xf32>
    %c0_14 = arith.constant 0 : index
    %c0_15 = arith.constant 0 : index
    %14 = vector.load %arg7[%c0_14, %c0_15] : memref<1x384xf32, #tpu.memory_space<vmem>>, vector<1x384xf32>
    %15 = vector.broadcast %14 : vector<1x384xf32> to vector<2x384xf32>
    %16 = arith.addf %13, %15 : vector<2x384xf32>
    %cst_16 = arith.constant 0.000000e+00 : f32
    %17 = vector.broadcast %cst_16 : f32 to vector<2x384xf32>
    %18 = arith.maximumf %16, %17 : vector<2x384xf32>
    %c0_17 = arith.constant 0 : index
    %c0_18 = arith.constant 0 : index
    %19 = vector.load %arg8[%c0_17, %c0_18] : memref<384x128xf32, #tpu.memory_space<vmem>>, vector<384x128xf32>
    %cst_19 = arith.constant dense<0.000000e+00> : vector<2x128xf32>
    %20 = tpu.matmul %18, %19, %cst_19 {dimension_numbers = #tpu.dot_dimension_numbers<[1], [0], [0], [1], [0, 0, 1, 1], [], []>} : vector<2x384xf32>, vector<384x128xf32>, vector<2x128xf32> -> vector<2x128xf32>
    %c0_20 = arith.constant 0 : index
    %c0_21 = arith.constant 0 : index
    %21 = vector.load %arg9[%c0_20, %c0_21] : memref<1x128xf32, #tpu.memory_space<vmem>>, vector<1x128xf32>
    %22 = vector.broadcast %21 : vector<1x128xf32> to vector<2x128xf32>
    %23 = arith.addf %20, %22 : vector<2x128xf32>
    %c0_22 = arith.constant 0 : index
    %c0_23 = arith.constant 0 : index
    %24 = vector.load %arg10[%c0_22, %c0_23] : memref<2x128xf32, #tpu.memory_space<vmem>>, vector<2x128xf32>
    tpu.vector_store %arg10[%c0_22, %c0_23], %23 {strides = array<i32>} : memref<2x128xf32, #tpu.memory_space<vmem>>, vector<2x128xf32>,
    return
  }
  func.func @transform_0(%arg0: i32) -> (i32, i32) {
    %c0_i32 = arith.constant 0 : i32
    %c0_i32_0 = arith.constant 0 : i32
    return %arg0, %c0_i32 : i32, i32
  }
  func.func @transform_1(%arg0: i32) -> (i32, i32) {
    %c0_i32 = arith.constant 0 : i32
    %c0_i32_0 = arith.constant 0 : i32
    return %arg0, %c0_i32 : i32, i32
  }
  func.func @transform_2(%arg0: i32) -> (i32, i32) {
    %c0_i32 = arith.constant 0 : i32
    %c0_i32_0 = arith.constant 0 : i32
    %c0_i32_1 = arith.constant 0 : i32
    return %c0_i32, %c0_i32_0 : i32, i32
  }
  func.func @transform_3(%arg0: i32) -> (i32, i32) {
    %c0_i32 = arith.constant 0 : i32
    %c0_i32_0 = arith.constant 0 : i32
    %c0_i32_1 = arith.constant 0 : i32
    return %c0_i32, %c0_i32_0 : i32, i32
  }
  func.func @transform_4(%arg0: i32) -> (i32, i32) {
    %c0_i32 = arith.constant 0 : i32
    %c0_i32_0 = arith.constant 0 : i32
    %c0_i32_1 = arith.constant 0 : i32
    return %c0_i32, %c0_i32_0 : i32, i32
  }
  func.func @transform_5(%arg0: i32) -> (i32, i32) {
    %c0_i32 = arith.constant 0 : i32
    %c0_i32_0 = arith.constant 0 : i32
    %c0_i32_1 = arith.constant 0 : i32
    return %c0_i32, %c0_i32_0 : i32, i32
  }
  func.func @transform_6(%arg0: i32) -> (i32, i32) {
    %c0_i32 = arith.constant 0 : i32
    %c0_i32_0 = arith.constant 0 : i32
    %c0_i32_1 = arith.constant 0 : i32
    return %c0_i32, %c0_i32_0 : i32, i32
  }
  func.func @transform_7(%arg0: i32) -> (i32, i32) {
    %c0_i32 = arith.constant 0 : i32
    %c0_i32_0 = arith.constant 0 : i32
    %c0_i32_1 = arith.constant 0 : i32
    return %c0_i32, %c0_i32_0 : i32, i32
  }
  func.func @transform_8(%arg0: i32) -> (i32, i32) {
    %c0_i32 = arith.constant 0 : i32
    %c0_i32_0 = arith.constant 0 : i32
    %c0_i32_1 = arith.constant 0 : i32
    return %c0_i32, %c0_i32_0 : i32, i32
  }
  func.func @transform_9(%arg0: i32) -> (i32, i32) {
    %c0_i32 = arith.constant 0 : i32
    %c0_i32_0 = arith.constant 0 : i32
    return %arg0, %c0_i32 : i32, i32
  }
}

</mosaic_0001>

<llo_original>
// kernel: tpu_custom_call.1
$region0: #{tpu_custom_call.1}
  #allocation0 [shape = 'u32[]', space=smem, size = 0x4, offset = 0x4, fixed_abs, tag = 'smem constant byte address 0x4 - core index']
  #allocation1 [shape = 'u32[144,128]{1,0:T(1,128)}', space=vmem, size = 0x12000, scoped, tag = 'internal scratch']
  %s0 = inlined_call_operand.hbm [shape: f32[2,16], index: 0, kind: input, shape index: {}]
  %s1 = inlined_call_operand.hbm [shape: f32[2,4], index: 1, kind: input, shape index: {}]
  %s2 = inlined_call_operand.hbm [shape: f32[16,384], index: 2, kind: input, shape index: {}]
  %s3 = inlined_call_operand.hbm [shape: f32[4,384], index: 3, kind: input, shape index: {}]
  %s4 = inlined_call_operand.vmem [shape: f32[1,384], index: 4, kind: input, shape index: {}]
  %s5 = inlined_call_operand.hbm [shape: f32[384,384], index: 5, kind: input, shape index: {}]
  %s6 = inlined_call_operand.vmem [shape: f32[1,384], index: 6, kind: input, shape index: {}]
  %s7 = inlined_call_operand.hbm [shape: f32[384,128], index: 7, kind: input, shape index: {}]
  %s8 = inlined_call_operand.vmem [shape: f32[1,128], index: 8, kind: input, shape index: {}]
  %s9 = inlined_call_operand.hbm [shape: f32[2,128], index: 9, kind: output, shape index: {}]
  %s10 = sld [smem:[#allocation0]]
  $region70: #{tpu_custom_call.1} parent=0
    _
  %s12 = ssub.s32 1, %s10
  %s13 = scalar_select 0, %s12, %s10
  $region1: #{tpu_custom_call.1} parent=0
    #allocation2 [shape = 'u8[1024]{0}', space=vmem, size = 0x400, scoped, tag = 'input window, operand 0, single buffered']
    #allocation3 [shape = 's32[1]{0}', space=sflag, size = 0x4, scoped, tag = 'scoped memory for tpu_custom_call.1']
    #allocation4 [shape = 's32[1]{0}', space=sflag, size = 0x4, scoped, tag = 'scoped memory for tpu_custom_call.1']
    #allocation5 [shape = 'u8[1024]{0}', space=vmem, size = 0x400, scoped, tag = 'input window, operand 1, single buffered']
    #allocation6 [shape = 's32[1]{0}', space=sflag, size = 0x4, scoped, tag = 'scoped memory for tpu_custom_call.1']
    #allocation7 [shape = 'u8[24576]{0}', space=vmem, size = 0x6000, scoped, tag = 'input window, operand 2, single buffered']
    #allocation8 [shape = 'u8[6144]{0}', space=vmem, size = 0x1800, scoped, tag = 'input window, operand 3, single buffered']
    #allocation9 [shape = 's32[1]{0}', space=sflag, size = 0x4, scoped, tag = 'scoped memory for tpu_custom_call.1']
    #allocation10 [shape = 'u8[589824]{0}', space=vmem, size = 0x90000, scoped, tag = 'input window, operand 5, single buffered']
    #allocation11 [shape = 'u8[196608]{0}', space=vmem, size = 0x30000, scoped, tag = 'input window, operand 7, single buffered']
    #allocation12 [shape = 's32[1]{0}', space=sflag, size = 0x4, scoped, tag = 'scoped memory for tpu_custom_call.1']
    #allocation13 [shape = 'u8[1024]{0}', space=vmem, size = 0x400, scoped, tag = 'output window, operand 0, single buffered']
    %14 = vsyncpa [#allocation3], 0
    %15 = vsyncpa [#allocation6], 0
    %16 = vsyncpa [#allocation9], 0
    %17 = vsyncpa [#allocation12], 0
    %18 = vsyncpa [#allocation4], 0
    // Predicated region
    $region2: #{tpu_custom_call.1} parent=1 // pred_check
      _
    $region3: #{tpu_custom_call.1} parent=1 // pred_check_branch
      %20 = sbr.rel (0) target = $region5
    $region4: #{tpu_custom_call.1} parent=1 // pred_region
      %s22 = ssub.s32 32, 32
      %23 = vsyncadd [#allocation3], %s22
      %s25 = sshll.u32 [#allocation2], 4
      %s26 = int_to_ptr.vmem [resolvable:$true] %s25
      %28 = dma.hbm_to_vmem [thread:$0]  %s0, 32, %s26, [#allocation3]
    $region5: #{tpu_custom_call.1} parent=1 // pred_fallthru
      _
    // Predicated region
    $region6: #{tpu_custom_call.1} parent=1 // pred_check
      _
    $region7: #{tpu_custom_call.1} parent=1 // pred_check_branch
      %30 = sbr.rel (0) target = $region9
    $region8: #{tpu_custom_call.1} parent=1 // pred_region
      %s32 = ssub.s32 32, 32
      %33 = vsyncadd [#allocation6], %s32
      %s35 = sshll.u32 [#allocation5], 4
      %s36 = int_to_ptr.vmem [resolvable:$true] %s35
      %38 = dma.hbm_to_vmem [thread:$0]  %s1, 32, %s36, [#allocation6]
    $region9: #{tpu_custom_call.1} parent=1 // pred_fallthru
      _
    // Predicated region
    $region10: #{tpu_custom_call.1} parent=1 // pred_check
      _
    $region11: #{tpu_custom_call.1} parent=1 // pred_check_branch
      %40 = sbr.rel (0) target = $region13
    $region12: #{tpu_custom_call.1} parent=1 // pred_region
      %s42 = ssub.s32 768, 768
      %43 = vsyncadd [#allocation6], %s42
      %s44 = sshll.u32 [#allocation7], 4
      %s45 = int_to_ptr.vmem [resolvable:$true] %s44
      %50 = dma.hbm_to_vmem [thread:$0]  %s2, 768, %s45, [#allocation6], 384, 384, 24
    $region13: #{tpu_custom_call.1} parent=1 // pred_fallthru
      _
    // Predicated region
    $region14: #{tpu_custom_call.1} parent=1 // pred_check
      _
    $region15: #{tpu_custom_call.1} parent=1 // pred_check_branch
      %52 = sbr.rel (0) target = $region17
    $region16: #{tpu_custom_call.1} parent=1 // pred_region
      %s54 = ssub.s32 192, 192
      %55 = vsyncadd [#allocation9], %s54
      %s57 = sshll.u32 [#allocation8], 4
      %s58 = int_to_ptr.vmem [resolvable:$true] %s57
      %60 = dma.hbm_to_vmem [thread:$0]  %s3, 192, %s58, [#allocation9]
    $region17: #{tpu_custom_call.1} parent=1 // pred_fallthru
      _
    // Predicated region
    $region18: #{tpu_custom_call.1} parent=1 // pred_check
      _
    $region19: #{tpu_custom_call.1} parent=1 // pred_check_branch
      %62 = sbr.rel (0) target = $region21
    $region20: #{tpu_custom_call.1} parent=1 // pred_region
      _
    $region21: #{tpu_custom_call.1} parent=1 // pred_fallthru
      _
    // Predicated region
    $region22: #{tpu_custom_call.1} parent=1 // pred_check
      _
    $region23: #{tpu_custom_call.1} parent=1 // pred_check_branch
      %64 = sbr.rel (0) target = $region25
    $region24: #{tpu_custom_call.1} parent=1 // pred_region
      %s66 = ssub.s32 18432, 18432
      %67 = vsyncadd [#allocation9], %s66
      %s68 = sshll.u32 [#allocation10], 4
      %s69 = int_to_ptr.vmem [resolvable:$true] %s68
      %74 = dma.hbm_to_vmem [thread:$0]  %s5, 18432, %s69, [#allocation9], 384, 384, 24
    $region25: #{tpu_custom_call.1} parent=1 // pred_fallthru
      _
    // Predicated region
    $region26: #{tpu_custom_call.1} parent=1 // pred_check
      _
    $region27: #{tpu_custom_call.1} parent=1 // pred_check_branch
      %76 = sbr.rel (0) target = $region29
    $region28: #{tpu_custom_call.1} parent=1 // pred_region
      _
    $region29: #{tpu_custom_call.1} parent=1 // pred_fallthru
      _
    // Predicated region
    $region30: #{tpu_custom_call.1} parent=1 // pred_check
      _
    $region31: #{tpu_custom_call.1} parent=1 // pred_check_branch
      %78 = sbr.rel (0) target = $region33
    $region32: #{tpu_custom_call.1} parent=1 // pred_region
      %s80 = ssub.s32 6144, 6144
      %81 = vsyncadd [#allocation12], %s80
      %s82 = sshll.u32 [#allocation11], 4
      %s83 = int_to_ptr.vmem [resolvable:$true] %s82
      %88 = dma.hbm_to_vmem [thread:$0]  %s7, 6144, %s83, [#allocation12], 128, 128, 8
    $region33: #{tpu_custom_call.1} parent=1 // pred_fallthru
      _
    // Predicated region
    $region34: #{tpu_custom_call.1} parent=1 // pred_check
      _
    $region35: #{tpu_custom_call.1} parent=1 // pred_check_branch
      %90 = sbr.rel (0) target = $region37
    $region36: #{tpu_custom_call.1} parent=1 // pred_region
      _
    $region37: #{tpu_custom_call.1} parent=1 // pred_fallthru
      _
    // Predicated region
    $region38: #{tpu_custom_call.1} parent=1 // pred_check
      _
    $region39: #{tpu_custom_call.1} parent=1 // pred_check_branch
      %92 = sbr.rel (0) target = $region41
    $region40: #{tpu_custom_call.1} parent=1 // pred_region
      %93 = dma.done [#allocation3], 32
    $region41: #{tpu_custom_call.1} parent=1 // pred_fallthru
      _
    // Predicated region
    $region42: #{tpu_custom_call.1} parent=1 // pred_check
      _
    $region43: #{tpu_custom_call.1} parent=1 // pred_check_branch
      %95 = sbr.rel (0) target = $region45
    $region44: #{tpu_custom_call.1} parent=1 // pred_region
      %96 = dma.done [#allocation6], 32
    $region45: #{tpu_custom_call.1} parent=1 // pred_fallthru
      _
    // Predicated region
    $region46: #{tpu_custom_call.1} parent=1 // pred_check
      _
    $region47: #{tpu_custom_call.1} parent=1 // pred_check_branch
      %98 = sbr.rel (0) target = $region49
    $region48: #{tpu_custom_call.1} parent=1 // pred_region
      %99 = dma.done [#allocation6], 768
    $region49: #{tpu_custom_call.1} parent=1 // pred_fallthru
      _
    // Predicated region
    $region50: #{tpu_custom_call.1} parent=1 // pred_check
      _
    $region51: #{tpu_custom_call.1} parent=1 // pred_check_branch
      %101 = sbr.rel (0) target = $region53
    $region52: #{tpu_custom_call.1} parent=1 // pred_region
      %102 = dma.done [#allocation9], 192
    $region53: #{tpu_custom_call.1} parent=1 // pred_fallthru
      _
    // Predicated region
    $region54: #{tpu_custom_call.1} parent=1 // pred_check
      _
    $region55: #{tpu_custom_call.1} parent=1 // pred_check_branch
      %104 = sbr.rel (0) target = $region57
    $region56: #{tpu_custom_call.1} parent=1 // pred_region
      %105 = dma.done [#allocation9], 18432
    $region57: #{tpu_custom_call.1} parent=1 // pred_fallthru
      _
    // Predicated region
    $region58: #{tpu_custom_call.1} parent=1 // pred_check
      _
    $region59: #{tpu_custom_call.1} parent=1 // pred_check_branch
      %107 = sbr.rel (0) target = $region61
    $region60: #{tpu_custom_call.1} parent=1 // pred_region
      %108 = dma.done [#allocation12], 6144
    $region61: #{tpu_custom_call.1} parent=1 // pred_fallthru
      _
    %v109 = vld [vmem:[#allocation2] sm:$0x3]
    %v110 = vld [vmem:[#allocation5] sm:$0x3]
    %v111 = vld [vmem:[#allocation7] sm:$0xff]
    %v112 = vld [vmem:[#allocation7 + $0x8] sm:$0xff]
    %v113 = vld [vmem:[#allocation7 + $0x10] sm:$0xff]
    %v114 = vld [vmem:[#allocation7 + $0x18] sm:$0xff]
    %v115 = vld [vmem:[#allocation7 + $0x20] sm:$0xff]
    %v116 = vld [vmem:[#allocation7 + $0x28] sm:$0xff]
    %v117 = vld [vmem:[#allocation8] sm:$0xff]
    %v118 = vld [vmem:[#allocation8 + $0x8] sm:$0xf]
    %v121 = vcombine.high %v117, %v117
    %vm122 = vcmask 31744
    %v124 = vsel %vm122, %v110, 0
    %vm126 = vcmask 1043456
    %v127 = vsel %vm126, %v117, 0
    %v129 = vsel %vm126, %v121, 0
    %v131 = vsel %vm126, %v118, 0
    %133 = vmatprep.subr.mxu0 %v129
    %134 = vmatpush1.msra.mxu0 %v127
    %135 = vmatprep.subr.mxu0 0.0
    %136 = vmatpush1.msra.mxu0 0.0
    %137 = vmatprep.subr.mxu0 0.0
    %138 = vmatpush1.msra.mxu0 0.0
    %139 = vmatprep.subr.mxu0 0.0
    %140 = vmatpush1.msra.mxu0 0.0
    %141 = vmatprep.subr.mxu0 0.0
    %142 = vmatpush1.msra.mxu0 0.0
    %143 = vmatprep.subr.mxu0 0.0
    %144 = vmatpush1.msra.mxu0 0.0
    %145 = vmatprep.subr.mxu0 0.0
    %146 = vmatpush1.msra.mxu0 0.0
    %147 = vmatprep.subr.mxu0 0.0
    %148 = vmatpush1.msra.mxu0 0.0
    %149 = vmatprep.subr.mxu0 0.0
    %150 = vmatpush1.msra.mxu0 0.0
    %151 = vmatprep.subr.mxu0 0.0
    %152 = vmatpush1.msra.mxu0 0.0
    %153 = vmatprep.subr.mxu0 0.0
    %154 = vmatpush1.msra.mxu0 0.0
    %155 = vmatprep.subr.mxu0 0.0
    %156 = vmatpush1.msra.mxu0 0.0
    %157 = vmatprep.subr.mxu0 0.0
    %158 = vmatpush1.msra.mxu0 0.0
    %159 = vmatprep.subr.mxu0 0.0
    %160 = vmatpush1.msra.mxu0 0.0
    %161 = vmatprep.subr.mxu0 0.0
    %162 = vmatpush1.msra.mxu0 0.0
    %163 = vmatprep.subr.mxu0 0.0
    %164 = vmatpush1.msra.mxu0 0.0
    %165 = vmatprep.subr.mxu0 0.0
    %166 = vmatpush1.msra.mxu0 0.0
    %167 = vmatprep.subr.mxu0 0.0
    %168 = vmatpush1.msra.mxu0 0.0
    %169 = vmatprep.subr.mxu0 0.0
    %170 = vmatpush1.msra.mxu0 0.0
    %171 = vmatprep.subr.mxu0 0.0
    %172 = vmatpush1.msra.mxu0 0.0
    %173 = vmatprep.subr.mxu0 0.0
    %174 = vmatpush1.msra.mxu0 0.0
    %175 = vmatprep.subr.mxu0 0.0
    %176 = vmatpush1.msra.mxu0 0.0
    %177 = vmatprep.subr.mxu0 0.0
    %178 = vmatpush1.msra.mxu0 0.0
    %179 = vmatprep.subr.mxu0 0.0
    %180 = vmatpush1.msra.mxu0 0.0
    %181 = vmatprep.subr.mxu0 0.0
    %182 = vmatpush1.msra.mxu0 0.0
    %183 = vmatprep.subr.mxu0 0.0
    %184 = vmatpush1.msra.mxu0 0.0
    %185 = vmatprep.subr.mxu0 0.0
    %186 = vmatpush1.msra.mxu0 0.0
    %187 = vmatprep.subr.mxu0 0.0
    %188 = vmatpush1.msra.mxu0 0.0
    %189 = vmatprep.subr.mxu0 0.0
    %190 = vmatpush1.msra.mxu0 0.0
    %191 = vmatprep.subr.mxu0 0.0
    %192 = vmatpush1.msra.mxu0 0.0
    %193 = vmatprep.subr.mxu0 0.0
    %194 = vmatpush1.msra.mxu0 0.0
    %195 = vmatprep.subr.mxu0 0.0
    %196 = vmatpush1.msra.mxu0 0.0
    %197 = vmatprep.mubr.f32.mxu0 0.0
    %198 = vmatmul.mubr.f32.gmra.mrb[0].mxu0 %v124
    %v199 = vpop.f32.mrb[0].mxu0
    %v200 = vadd.f32 0.0, %v199
    %v201 = vpop.f32.mrb[0].mxu0
    %v202 = vadd.f32 0.0, %v201
    %203 = vdwg.mxu0
    %204 = vmatprep.subr.mxu0 0.0
    %205 = vmatpush1.msra.mxu0 %v131
    %206 = vmatprep.subr.mxu0 0.0
    %207 = vmatpush1.msra.mxu0 0.0
    %208 = vmatprep.subr.mxu0 0.0
    %209 = vmatpush1.msra.mxu0 0.0
    %210 = vmatprep.subr.mxu0 0.0
    %211 = vmatpush1.msra.mxu0 0.0
    %212 = vmatprep.subr.mxu0 0.0
    %213 = vmatpush1.msra.mxu0 0.0
    %214 = vmatprep.subr.mxu0 0.0
    %215 = vmatpush1.msra.mxu0 0.0
    %216 = vmatprep.subr.mxu0 0.0
    %217 = vmatpush1.msra.mxu0 0.0
    %218 = vmatprep.subr.mxu0 0.0
    %219 = vmatpush1.msra.mxu0 0.0
    %220 = vmatprep.subr.mxu0 0.0
    %221 = vmatpush1.msra.mxu0 0.0
    %222 = vmatprep.subr.mxu0 0.0
    %223 = vmatpush1.msra.mxu0 0.0
    %224 = vmatprep.subr.mxu0 0.0
    %225 = vmatpush1.msra.mxu0 0.0
    %226 = vmatprep.subr.mxu0 0.0
    %227 = vmatpush1.msra.mxu0 0.0
    %228 = vmatprep.subr.mxu0 0.0
    %229 = vmatpush1.msra.mxu0 0.0
    %230 = vmatprep.subr.mxu0 0.0
    %231 = vmatpush1.msra.mxu0 0.0
    %232 = vmatprep.subr.mxu0 0.0
    %233 = vmatpush1.msra.mxu0 0.0
    %234 = vmatprep.subr.mxu0 0.0
    %235 = vmatpush1.msra.mxu0 0.0
    %236 = vmatprep.subr.mxu0 0.0
    %237 = vmatpush1.msra.mxu0 0.0
    %238 = vmatprep.subr.mxu0 0.0
    %239 = vmatpush1.msra.mxu0 0.0
    %240 = vmatprep.subr.mxu0 0.0
    %241 = vmatpush1.msra.mxu0 0.0
    %242 = vmatprep.subr.mxu0 0.0
    %243 = vmatpush1.msra.mxu0 0.0
    %244 = vmatprep.subr.mxu0 0.0
    %245 = vmatpush1.msra.mxu0 0.0
    %246 = vmatprep.subr.mxu0 0.0
    %247 = vmatpush1.msra.mxu0 0.0
    %248 = vmatprep.subr.mxu0 0.0
    %249 = vmatpush1.msra.mxu0 0.0
    %250 = vmatprep.subr.mxu0 0.0
    %251 = vmatpush1.msra.mxu0 0.0
    %252 = vmatprep.subr.mxu0 0.0
    %253 = vmatpush1.msra.mxu0 0.0
    %254 = vmatprep.subr.mxu0 0.0
    %255 = vmatpush1.msra.mxu0 0.0
    %256 = vmatprep.subr.mxu0 0.0
    %257 = vmatpush1.msra.mxu0 0.0
    %258 = vmatprep.subr.mxu0 0.0
    %259 = vmatpush1.msra.mxu0 0.0
    %260 = vmatprep.subr.mxu0 0.0
    %261 = vmatpush1.msra.mxu0 0.0
    %262 = vmatprep.subr.mxu0 0.0
    %263 = vmatpush1.msra.mxu0 0.0
    %264 = vmatprep.subr.mxu0 0.0
    %265 = vmatpush1.msra.mxu0 0.0
    %266 = vmatprep.subr.mxu0 0.0
    %267 = vmatpush1.msra.mxu0 0.0
    %268 = vmatprep.mubr.f32.mxu0 0.0
    %269 = vmatmul.mubr.f32.gmra.mrb[0].mxu0 %v124
    %v270 = vpop.f32.mrb[0].mxu0
    %v271 = vadd.f32 0.0, %v270
    %v272 = vpop.f32.mrb[0].mxu0
    %273 = vdwg.mxu0
    %vm274 = vcmask 130048
    %v276 = vsel %vm274, %v109, 0
    %278 = vmatprep.subr.mxu0 %v112
    %279 = vmatpush1.msra.mxu0 %v111
    %280 = vmatprep.subr.mxu0 %v115
    %281 = vmatpush1.msra.mxu0 %v114
    %282 = vmatprep.subr.mxu0 0.0
    %283 = vmatpush1.msra.mxu0 0.0
    %284 = vmatprep.subr.mxu0 0.0
    %285 = vmatpush1.msra.mxu0 0.0
    %286 = vmatprep.subr.mxu0 0.0
    %287 = vmatpush1.msra.mxu0 0.0
    %288 = vmatprep.subr.mxu0 0.0
    %289 = vmatpush1.msra.mxu0 0.0
    %290 = vmatprep.subr.mxu0 0.0
    %291 = vmatpush1.msra.mxu0 0.0
    %292 = vmatprep.subr.mxu0 0.0
    %293 = vmatpush1.msra.mxu0 0.0
    %294 = vmatprep.subr.mxu0 0.0
    %295 = vmatpush1.msra.mxu0 0.0
    %296 = vmatprep.subr.mxu0 0.0
    %297 = vmatpush1.msra.mxu0 0.0
    %298 = vmatprep.subr.mxu0 0.0
    %299 = vmatpush1.msra.mxu0 0.0
    %300 = vmatprep.subr.mxu0 0.0
    %301 = vmatpush1.msra.mxu0 0.0
    %302 = vmatprep.subr.mxu0 0.0
    %303 = vmatpush1.msra.mxu0 0.0
    %304 = vmatprep.subr.mxu0 0.0
    %305 = vmatpush1.msra.mxu0 0.0
    %306 = vmatprep.subr.mxu0 0.0
    %307 = vmatpush1.msra.mxu0 0.0
    %308 = vmatprep.subr.mxu0 0.0
    %309 = vmatpush1.msra.mxu0 0.0
    %310 = vmatprep.subr.mxu0 0.0
    %311 = vmatpush1.msra.mxu0 0.0
    %312 = vmatprep.subr.mxu0 0.0
    %313 = vmatpush1.msra.mxu0 0.0
    %314 = vmatprep.subr.mxu0 0.0
    %315 = vmatpush1.msra.mxu0 0.0
    %316 = vmatprep.subr.mxu0 0.0
    %317 = vmatpush1.msra.mxu0 0.0
    %318 = vmatprep.subr.mxu0 0.0
    %319 = vmatpush1.msra.mxu0 0.0
    %320 = vmatprep.subr.mxu0 0.0
    %321 = vmatpush1.msra.mxu0 0.0
    %322 = vmatprep.subr.mxu0 0.0
    %323 = vmatpush1.msra.mxu0 0.0
    %324 = vmatprep.subr.mxu0 0.0
    %325 = vmatpush1.msra.mxu0 0.0
    %326 = vmatprep.subr.mxu0 0.0
    %327 = vmatpush1.msra.mxu0 0.0
    %328 = vmatprep.subr.mxu0 0.0
    %329 = vmatpush1.msra.mxu0 0.0
    %330 = vmatprep.subr.mxu0 0.0
    %331 = vmatpush1.msra.mxu0 0.0
    %332 = vmatprep.subr.mxu0 0.0
    %333 = vmatpush1.msra.mxu0 0.0
    %334 = vmatprep.subr.mxu0 0.0
    %335 = vmatpush1.msra.mxu0 0.0
    %336 = vmatprep.subr.mxu0 0.0
    %337 = vmatpush1.msra.mxu0 0.0
    %338 = vmatprep.subr.mxu0 0.0
    %339 = vmatpush1.msra.mxu0 0.0
    %340 = vmatprep.subr.mxu0 0.0
    %341 = vmatpush1.msra.mxu0 0.0
    %342 = vmatprep.mubr.f32.mxu0 0.0
    %343 = vmatmul.mubr.f32.gmra.mrb[0].mxu0 %v276
    %v344 = vpop.f32.mrb[0].mxu0
    %v345 = vadd.f32 %v200, %v344
    %v346 = vpop.f32.mrb[0].mxu0
    %v347 = vadd.f32 %v202, %v346
    %348 = vdwg.mxu0
    %349 = vmatprep.subr.mxu0 0.0
    %350 = vmatpush1.msra.mxu0 %v113
    %351 = vmatprep.subr.mxu0 0.0
    %352 = vmatpush1.msra.mxu0 %v116
    %353 = vmatprep.subr.mxu0 0.0
    %354 = vmatpush1.msra.mxu0 0.0
    %355 = vmatprep.subr.mxu0 0.0
    %356 = vmatpush1.msra.mxu0 0.0
    %357 = vmatprep.subr.mxu0 0.0
    %358 = vmatpush1.msra.mxu0 0.0
    %359 = vmatprep.subr.mxu0 0.0
    %360 = vmatpush1.msra.mxu0 0.0
    %361 = vmatprep.subr.mxu0 0.0
    %362 = vmatpush1.msra.mxu0 0.0
    %363 = vmatprep.subr.mxu0 0.0
    %364 = vmatpush1.msra.mxu0 0.0
    %365 = vmatprep.subr.mxu0 0.0
    %366 = vmatpush1.msra.mxu0 0.0
    %367 = vmatprep.subr.mxu0 0.0
    %368 = vmatpush1.msra.mxu0 0.0
    %369 = vmatprep.subr.mxu0 0.0
    %370 = vmatpush1.msra.mxu0 0.0
    %371 = vmatprep.subr.mxu0 0.0
    %372 = vmatpush1.msra.mxu0 0.0
    %373 = vmatprep.subr.mxu0 0.0
    %374 = vmatpush1.msra.mxu0 0.0
    %375 = vmatprep.subr.mxu0 0.0
    %376 = vmatpush1.msra.mxu0 0.0
    %377 = vmatprep.subr.mxu0 0.0
    %378 = vmatpush1.msra.mxu0 0.0
    %379 = vmatprep.subr.mxu0 0.0
    %380 = vmatpush1.msra.mxu0 0.0
    %381 = vmatprep.subr.mxu0 0.0
    %382 = vmatpush1.msra.mxu0 0.0
    %383 = vmatprep.subr.mxu0 0.0
    %384 = vmatpush1.msra.mxu0 0.0
    %385 = vmatprep.subr.mxu0 0.0
    %386 = vmatpush1.msra.mxu0 0.0
    %387 = vmatprep.subr.mxu0 0.0
    %388 = vmatpush1.msra.mxu0 0.0
    %389 = vmatprep.subr.mxu0 0.0
    %390 = vmatpush1.msra.mxu0 0.0
    %391 = vmatprep.subr.mxu0 0.0
    %392 = vmatpush1.msra.mxu0 0.0
    %393 = vmatprep.subr.mxu0 0.0
    %394 = vmatpush1.msra.mxu0 0.0
    %395 = vmatprep.subr.mxu0 0.0
    %396 = vmatpush1.msra.mxu0 0.0
    %397 = vmatprep.subr.mxu0 0.0
    %398 = vmatpush1.msra.mxu0 0.0
    %399 = vmatprep.subr.mxu0 0.0
    %400 = vmatpush1.msra.mxu0 0.0
    %401 = vmatprep.subr.mxu0 0.0
    %402 = vmatpush1.msra.mxu0 0.0
    %403 = vmatprep.subr.mxu0 0.0
    %404 = vmatpush1.msra.mxu0 0.0
    %405 = vmatprep.subr.mxu0 0.0
    %406 = vmatpush1.msra.mxu0 0.0
    %407 = vmatprep.subr.mxu0 0.0
    %408 = vmatpush1.msra.mxu0 0.0
    %409 = vmatprep.subr.mxu0 0.0
    %410 = vmatpush1.msra.mxu0 0.0
    %411 = vmatprep.subr.mxu0 0.0
    %412 = vmatpush1.msra.mxu0 0.0
    %413 = vmatprep.mubr.f32.mxu0 0.0
    %414 = vmatmul.mubr.f32.gmra.mrb[0].mxu0 %v276
    %v415 = vpop.f32.mrb[0].mxu0
    %v416 = vadd.f32 %v271, %v415
    %v417 = vpop.f32.mrb[0].mxu0
    %418 = vdwg.mxu0
    %v419 = vld [vmem:[%s4] sm:$0x7]
    %v421 = vlaneseq
    %v422 = vshrl.u32 %v421, 7
    %v423 = vsub.s32 0, %v422
    %v424 = vrot.slane %v419, %v423
    %v425 = vlaneseq
    %v426 = vshrl.u32 %v425, 7
    %v427 = vsub.s32 1, %v426
    %v428 = vrot.slane %v419, %v427
    %v429 = vlaneseq
    %v430 = vshrl.u32 %v429, 7
    %v431 = vsub.s32 2, %v430
    %v432 = vrot.slane %v419, %v431
    %v436 = vadd.f32 %v345, %v424
    %v437 = vadd.f32 %v347, %v428
    %v438 = vadd.f32 %v416, %v432
    %v439 = vmax.f32 %v436, 0.0
    %v440 = vmax.f32 %v437, 0.0
    %v441 = vmax.f32 %v438, 0.0
    %v442 = vld [vmem:[#allocation10] sm:$0xff]
    %v443 = vld [vmem:[#allocation10 + $0x8] sm:$0xff]
    %v444 = vld [vmem:[#allocation10 + $0x10] sm:$0xff]
    %v445 = vld [vmem:[#allocation10 + $0x18] sm:$0xff]
    %v446 = vld [vmem:[#allocation10 + $0x20] sm:$0xff]
    %v447 = vld [vmem:[#allocation10 + $0x28] sm:$0xff]
    %v448 = vld [vmem:[#allocation10 + $0x30] sm:$0xff]
    %v449 = vld [vmem:[#allocation10 + $0x38] sm:$0xff]
    %v450 = vld [vmem:[#allocation10 + $0x40] sm:$0xff]
    %v451 = vld [vmem:[#allocation10 + $0x48] sm:$0xff]
    %v452 = vld [vmem:[#allocation10 + $0x50] sm:$0xff]
    %v453 = vld [vmem:[#allocation10 + $0x58] sm:$0xff]
    %v454 = vld [vmem:[#allocation10 + $0x60] sm:$0xff]
    %v455 = vld [vmem:[#allocation10 + $0x68] sm:$0xff]
    %v456 = vld [vmem:[#allocation10 + $0x70] sm:$0xff]
    %v457 = vld [vmem:[#allocation10 + $0x78] sm:$0xff]
    %v458 = vld [vmem:[#allocation10 + $0x80] sm:$0xff]
    %v459 = vld [vmem:[#allocation10 + $0x88] sm:$0xff]
    %v460 = vld [vmem:[#allocation10 + $0x90] sm:$0xff]
    %v461 = vld [vmem:[#allocation10 + $0x98] sm:$0xff]
    %v462 = vld [vmem:[#allocation10 + $0xa0] sm:$0xff]
    %v463 = vld [vmem:[#allocation10 + $0xa8] sm:$0xff]
    %v464 = vld [vmem:[#allocation10 + $0xb0] sm:$0xff]
    %v465 = vld [vmem:[#allocation10 + $0xb8] sm:$0xff]
    %v466 = vld [vmem:[#allocation10 + $0xc0] sm:$0xff]
    %v467 = vld [vmem:[#allocation10 + $0xc8] sm:$0xff]
    %v468 = vld [vmem:[#allocation10 + $0xd0] sm:$0xff]
    %v469 = vld [vmem:[#allocation10 + $0xd8] sm:$0xff]
    %v470 = vld [vmem:[#allocation10 + $0xe0] sm:$0xff]
    %v471 = vld [vmem:[#allocation10 + $0xe8] sm:$0xff]
    %v472 = vld [vmem:[#allocation10 + $0xf0] sm:$0xff]
    %v473 = vld [vmem:[#allocation10 + $0xf8] sm:$0xff]
    %v474 = vld [vmem:[#allocation10 + $0x100] sm:$0xff]
    %v475 = vld [vmem:[#allocation10 + $0x108] sm:$0xff]
    %v476 = vld [vmem:[#allocation10 + $0x110] sm:$0xff]
    %v477 = vld [vmem:[#allocation10 + $0x118] sm:$0xff]
    %v478 = vld [vmem:[#allocation10 + $0x120] sm:$0xff]
    %v479 = vld [vmem:[#allocation10 + $0x128] sm:$0xff]
    %v480 = vld [vmem:[#allocation10 + $0x130] sm:$0xff]
    %v481 = vld [vmem:[#allocation10 + $0x138] sm:$0xff]
    %v482 = vld [vmem:[#allocation10 + $0x140] sm:$0xff]
    %v483 = vld [vmem:[#allocation10 + $0x148] sm:$0xff]
    %v484 = vld [vmem:[#allocation10 + $0x150] sm:$0xff]
    %v485 = vld [vmem:[#allocation10 + $0x158] sm:$0xff]
    %v486 = vld [vmem:[#allocation10 + $0x160] sm:$0xff]
    %v487 = vld [vmem:[#allocation10 + $0x168] sm:$0xff]
    %v488 = vld [vmem:[#allocation10 + $0x170] sm:$0xff]
    %v489 = vld [vmem:[#allocation10 + $0x178] sm:$0xff]
    %v490 = vld [vmem:[#allocation10 + $0x180] sm:$0xff]
    %v491 = vld [vmem:[#allocation10 + $0x188] sm:$0xff]
    %v492 = vld [vmem:[#allocation10 + $0x190] sm:$0xff]
    %v493 = vld [vmem:[#allocation10 + $0x198] sm:$0xff]
    %v494 = vld [vmem:[#allocation10 + $0x1a0] sm:$0xff]
    %v495 = vld [vmem:[#allocation10 + $0x1a8] sm:$0xff]
    %v496 = vld [vmem:[#allocation10 + $0x1b0] sm:$0xff]
    %v497 = vld [vmem:[#allocation10 + $0x1b8] sm:$0xff]
    %v498 = vld [vmem:[#allocation10 + $0x1c0] sm:$0xff]
    %v499 = vld [vmem:[#allocation10 + $0x1c8] sm:$0xff]
    %v500 = vld [vmem:[#allocation10 + $0x1d0] sm:$0xff]
    %v501 = vld [vmem:[#allocation10 + $0x1d8] sm:$0xff]
    %v502 = vld [vmem:[#allocation10 + $0x1e0] sm:$0xff]
    %v503 = vld [vmem:[#allocation10 + $0x1e8] sm:$0xff]
    %v504 = vld [vmem:[#allocation10 + $0x1f0] sm:$0xff]
    %v505 = vld [vmem:[#allocation10 + $0x1f8] sm:$0xff]
    %v506 = vld [vmem:[#allocation10 + $0x200] sm:$0xff]
    %v507 = vld [vmem:[#allocation10 + $0x208] sm:$0xff]
    %v508 = vld [vmem:[#allocation10 + $0x210] sm:$0xff]
    %v509 = vld [vmem:[#allocation10 + $0x218] sm:$0xff]
    %v510 = vld [vmem:[#allocation10 + $0x220] sm:$0xff]
    %v511 = vld [vmem:[#allocation10 + $0x228] sm:$0xff]
    %v512 = vld [vmem:[#allocation10 + $0x230] sm:$0xff]
    %v513 = vld [vmem:[#allocation10 + $0x238] sm:$0xff]
    %v514 = vld [vmem:[#allocation10 + $0x240] sm:$0xff]
    %v515 = vld [vmem:[#allocation10 + $0x248] sm:$0xff]
    %v516 = vld [vmem:[#allocation10 + $0x250] sm:$0xff]
    %v517 = vld [vmem:[#allocation10 + $0x258] sm:$0xff]
    %v518 = vld [vmem:[#allocation10 + $0x260] sm:$0xff]
    %v519 = vld [vmem:[#allocation10 + $0x268] sm:$0xff]
    %v520 = vld [vmem:[#allocation10 + $0x270] sm:$0xff]
    %v521 = vld [vmem:[#allocation10 + $0x278] sm:$0xff]
    %v522 = vld [vmem:[#allocation10 + $0x280] sm:$0xff]
    %v523 = vld [vmem:[#allocation10 + $0x288] sm:$0xff]
    %v524 = vld [vmem:[#allocation10 + $0x290] sm:$0xff]
    %v525 = vld [vmem:[#allocation10 + $0x298] sm:$0xff]
    %v526 = vld [vmem:[#allocation10 + $0x2a0] sm:$0xff]
    %v527 = vld [vmem:[#allocation10 + $0x2a8] sm:$0xff]
    %v528 = vld [vmem:[#allocation10 + $0x2b0] sm:$0xff]
    %v529 = vld [vmem:[#allocation10 + $0x2b8] sm:$0xff]
    %v530 = vld [vmem:[#allocation10 + $0x2c0] sm:$0xff]
    %v531 = vld [vmem:[#allocation10 + $0x2c8] sm:$0xff]
    %v532 = vld [vmem:[#allocation10 + $0x2d0] sm:$0xff]
    %v533 = vld [vmem:[#allocation10 + $0x2d8] sm:$0xff]
    %v534 = vld [vmem:[#allocation10 + $0x2e0] sm:$0xff]
    %v535 = vld [vmem:[#allocation10 + $0x2e8] sm:$0xff]
    %v536 = vld [vmem:[#allocation10 + $0x2f0] sm:$0xff]
    %v537 = vld [vmem:[#allocation10 + $0x2f8] sm:$0xff]
    %v538 = vld [vmem:[#allocation10 + $0x300] sm:$0xff]
    %v539 = vld [vmem:[#allocation10 + $0x308] sm:$0xff]
    %v540 = vld [vmem:[#allocation10 + $0x310] sm:$0xff]
    %v541 = vld [vmem:[#allocation10 + $0x318] sm:$0xff]
    %v542 = vld [vmem:[#allocation10 + $0x320] sm:$0xff]
    %v543 = vld [vmem:[#allocation10 + $0x328] sm:$0xff]
    %v544 = vld [vmem:[#allocation10 + $0x330] sm:$0xff]
    %v545 = vld [vmem:[#allocation10 + $0x338] sm:$0xff]
    %v546 = vld [vmem:[#allocation10 + $0x340] sm:$0xff]
    %v547 = vld [vmem:[#allocation10 + $0x348] sm:$0xff]
    %v548 = vld [vmem:[#allocation10 + $0x350] sm:$0xff]
    %v549 = vld [vmem:[#allocation10 + $0x358] sm:$0xff]
    %v550 = vld [vmem:[#allocation10 + $0x360] sm:$0xff]
    %v551 = vld [vmem:[#allocation10 + $0x368] sm:$0xff]
    %v552 = vld [vmem:[#allocation10 + $0x370] sm:$0xff]
    %v553 = vld [vmem:[#allocation10 + $0x378] sm:$0xff]
    %v554 = vld [vmem:[#allocation10 + $0x380] sm:$0xff]
    %v555 = vld [vmem:[#allocation10 + $0x388] sm:$0xff]
    %v556 = vld [vmem:[#allocation10 + $0x390] sm:$0xff]
    %v557 = vld [vmem:[#allocation10 + $0x398] sm:$0xff]
    %v558 = vld [vmem:[#allocation10 + $0x3a0] sm:$0xff]
    %v559 = vld [vmem:[#allocation10 + $0x3a8] sm:$0xff]
    %v560 = vld [vmem:[#allocation10 + $0x3b0] sm:$0xff]
    %v561 = vld [vmem:[#allocation10 + $0x3b8] sm:$0xff]
    %v562 = vld [vmem:[#allocation10 + $0x3c0] sm:$0xff]
    %v563 = vld [vmem:[#allocation10 + $0x3c8] sm:$0xff]
    %v564 = vld [vmem:[#allocation10 + $0x3d0] sm:$0xff]
    %v565 = vld [vmem:[#allocation10 + $0x3d8] sm:$0xff]
    %v566 = vld [vmem:[#allocation10 + $0x3e0] sm:$0xff]
    %v567 = vld [vmem:[#allocation10 + $0x3e8] sm:$0xff]
    %v568 = vld [vmem:[#allocation10 + $0x3f0] sm:$0xff]
    %v569 = vld [vmem:[#allocation10 + $0x3f8] sm:$0xff]
    %v570 = vld [vmem:[#allocation10 + $0x400] sm:$0xff]
    %v571 = vld [vmem:[#allocation10 + $0x408] sm:$0xff]
    %v572 = vld [vmem:[#allocation10 + $0x410] sm:$0xff]
    %v573 = vld [vmem:[#allocation10 + $0x418] sm:$0xff]
    %v574 = vld [vmem:[#allocation10 + $0x420] sm:$0xff]
    %v575 = vld [vmem:[#allocation10 + $0x428] sm:$0xff]
    %v576 = vld [vmem:[#allocation10 + $0x430] sm:$0xff]
    %v577 = vld [vmem:[#allocation10 + $0x438] sm:$0xff]
    %v578 = vld [vmem:[#allocation10 + $0x440] sm:$0xff]
    %v579 = vld [vmem:[#allocation10 + $0x448] sm:$0xff]
    %v580 = vld [vmem:[#allocation10 + $0x450] sm:$0xff]
    %v581 = vld [vmem:[#allocation10 + $0x458] sm:$0xff]
    %v582 = vld [vmem:[#allocation10 + $0x460] sm:$0xff]
    %v583 = vld [vmem:[#allocation10 + $0x468] sm:$0xff]
    %v584 = vld [vmem:[#allocation10 + $0x470] sm:$0xff]
    %v585 = vld [vmem:[#allocation10 + $0x478] sm:$0xff]
    %v586 = vld [vmem:[%s6] sm:$0x7]
    %v588 = vlaneseq
    %v589 = vshrl.u32 %v588, 7
    %v590 = vsub.s32 0, %v589
    %v591 = vrot.slane %v586, %v590
    %v592 = vlaneseq
    %v593 = vshrl.u32 %v592, 7
    %v594 = vsub.s32 1, %v593
    %v595 = vrot.slane %v586, %v594
    %v596 = vlaneseq
    %v597 = vshrl.u32 %v596, 7
    %v598 = vsub.s32 2, %v597
    %v599 = vrot.slane %v586, %v598
    %603 = vmatprep.subr.mxu0 %v443
    %604 = vmatpush1.msra.mxu0 %v442
    %605 = vmatprep.subr.mxu0 %v446
    %606 = vmatpush1.msra.mxu0 %v445
    %607 = vmatprep.subr.mxu0 %v449
    %608 = vmatpush1.msra.mxu0 %v448
    %609 = vmatprep.subr.mxu0 %v452
    %610 = vmatpush1.msra.mxu0 %v451
    %611 = vmatprep.subr.mxu0 %v455
    %612 = vmatpush1.msra.mxu0 %v454
    %613 = vmatprep.subr.mxu0 %v458
    %614 = vmatpush1.msra.mxu0 %v457
    %615 = vmatprep.subr.mxu0 %v461
    %616 = vmatpush1.msra.mxu0 %v460
    %617 = vmatprep.subr.mxu0 %v464
    %618 = vmatpush1.msra.mxu0 %v463
    %619 = vmatprep.subr.mxu0 %v467
    %620 = vmatpush1.msra.mxu0 %v466
    %621 = vmatprep.subr.mxu0 %v470
    %622 = vmatpush1.msra.mxu0 %v469
    %623 = vmatprep.subr.mxu0 %v473
    %624 = vmatpush1.msra.mxu0 %v472
    %625 = vmatprep.subr.mxu0 %v476
    %626 = vmatpush1.msra.mxu0 %v475
    %627 = vmatprep.subr.mxu0 %v479
    %628 = vmatpush1.msra.mxu0 %v478
    %629 = vmatprep.subr.mxu0 %v482
    %630 = vmatpush1.msra.mxu0 %v481
    %631 = vmatprep.subr.mxu0 %v485
    %632 = vmatpush1.msra.mxu0 %v484
    %633 = vmatprep.subr.mxu0 %v488
    %634 = vmatpush1.msra.mxu0 %v487
    %635 = vmatprep.subr.mxu0 %v491
    %636 = vmatpush1.msra.mxu0 %v490
    %637 = vmatprep.subr.mxu0 %v494
    %638 = vmatpush1.msra.mxu0 %v493
    %639 = vmatprep.subr.mxu0 %v497
    %640 = vmatpush1.msra.mxu0 %v496
    %641 = vmatprep.subr.mxu0 %v500
    %642 = vmatpush1.msra.mxu0 %v499
    %643 = vmatprep.subr.mxu0 %v503
    %644 = vmatpush1.msra.mxu0 %v502
    %645 = vmatprep.subr.mxu0 %v506
    %646 = vmatpush1.msra.mxu0 %v505
    %647 = vmatprep.subr.mxu0 %v509
    %648 = vmatpush1.msra.mxu0 %v508
    %649 = vmatprep.subr.mxu0 %v512
    %650 = vmatpush1.msra.mxu0 %v511
    %651 = vmatprep.subr.mxu0 %v515
    %652 = vmatpush1.msra.mxu0 %v514
    %653 = vmatprep.subr.mxu0 %v518
    %654 = vmatpush1.msra.mxu0 %v517
    %655 = vmatprep.subr.mxu0 %v521
    %656 = vmatpush1.msra.mxu0 %v520
    %657 = vmatprep.subr.mxu0 %v524
    %658 = vmatpush1.msra.mxu0 %v523
    %659 = vmatprep.subr.mxu0 %v527
    %660 = vmatpush1.msra.mxu0 %v526
    %661 = vmatprep.subr.mxu0 %v530
    %662 = vmatpush1.msra.mxu0 %v529
    %663 = vmatprep.subr.mxu0 %v533
    %664 = vmatpush1.msra.mxu0 %v532
    %665 = vmatprep.subr.mxu0 %v536
    %666 = vmatpush1.msra.mxu0 %v535
    %667 = vmatprep.mubr.f32.mxu0 %v440
    %668 = vmatmul.mubr.f32.gmra.mrb[0].mxu0 %v439
    %v669 = vpop.f32.mrb[0].mxu0
    %v670 = vadd.f32 %v591, %v669
    %v671 = vpop.f32.mrb[0].mxu0
    %v672 = vadd.f32 %v595, %v671
    %673 = vdwg.mxu0
    %674 = vmatprep.subr.mxu0 %v539
    %675 = vmatpush1.msra.mxu0 %v538
    %676 = vmatprep.subr.mxu0 %v542
    %677 = vmatpush1.msra.mxu0 %v541
    %678 = vmatprep.subr.mxu0 %v545
    %679 = vmatpush1.msra.mxu0 %v544
    %680 = vmatprep.subr.mxu0 %v548
    %681 = vmatpush1.msra.mxu0 %v547
    %682 = vmatprep.subr.mxu0 %v551
    %683 = vmatpush1.msra.mxu0 %v550
    %684 = vmatprep.subr.mxu0 %v554
    %685 = vmatpush1.msra.mxu0 %v553
    %686 = vmatprep.subr.mxu0 %v557
    %687 = vmatpush1.msra.mxu0 %v556
    %688 = vmatprep.subr.mxu0 %v560
    %689 = vmatpush1.msra.mxu0 %v559
    %690 = vmatprep.subr.mxu0 %v563
    %691 = vmatpush1.msra.mxu0 %v562
    %692 = vmatprep.subr.mxu0 %v566
    %693 = vmatpush1.msra.mxu0 %v565
    %694 = vmatprep.subr.mxu0 %v569
    %695 = vmatpush1.msra.mxu0 %v568
    %696 = vmatprep.subr.mxu0 %v572
    %697 = vmatpush1.msra.mxu0 %v571
    %698 = vmatprep.subr.mxu0 %v575
    %699 = vmatpush1.msra.mxu0 %v574
    %700 = vmatprep.subr.mxu0 %v578
    %701 = vmatpush1.msra.mxu0 %v577
    %702 = vmatprep.subr.mxu0 %v581
    %703 = vmatpush1.msra.mxu0 %v580
    %704 = vmatprep.subr.mxu0 %v584
    %705 = vmatpush1.msra.mxu0 %v583
    %706 = vmatprep.subr.mxu0 0.0
    %707 = vmatpush1.msra.mxu0 0.0
    %708 = vmatprep.subr.mxu0 0.0
    %709 = vmatpush1.msra.mxu0 0.0
    %710 = vmatprep.subr.mxu0 0.0
    %711 = vmatpush1.msra.mxu0 0.0
    %712 = vmatprep.subr.mxu0 0.0
    %713 = vmatpush1.msra.mxu0 0.0
    %714 = vmatprep.subr.mxu0 0.0
    %715 = vmatpush1.msra.mxu0 0.0
    %716 = vmatprep.subr.mxu0 0.0
    %717 = vmatpush1.msra.mxu0 0.0
    %718 = vmatprep.subr.mxu0 0.0
    %719 = vmatpush1.msra.mxu0 0.0
    %720 = vmatprep.subr.mxu0 0.0
    %721 = vmatpush1.msra.mxu0 0.0
    %722 = vmatprep.subr.mxu0 0.0
    %723 = vmatpush1.msra.mxu0 0.0
    %724 = vmatprep.subr.mxu0 0.0
    %725 = vmatpush1.msra.mxu0 0.0
    %726 = vmatprep.subr.mxu0 0.0
    %727 = vmatpush1.msra.mxu0 0.0
    %728 = vmatprep.subr.mxu0 0.0
    %729 = vmatpush1.msra.mxu0 0.0
    %730 = vmatprep.subr.mxu0 0.0
    %731 = vmatpush1.msra.mxu0 0.0
    %732 = vmatprep.subr.mxu0 0.0
    %733 = vmatpush1.msra.mxu0 0.0
    %734 = vmatprep.subr.mxu0 0.0
    %735 = vmatpush1.msra.mxu0 0.0
    %736 = vmatprep.subr.mxu0 0.0
    %737 = vmatpush1.msra.mxu0 0.0
    %738 = vmatprep.mubr.f32.mxu0 0.0
    %739 = vmatmul.mubr.f32.gmra.mrb[0].mxu0 %v441
    %v740 = vpop.f32.mrb[0].mxu0
    %v741 = vadd.f32 %v670, %v740
    %v742 = vpop.f32.mrb[0].mxu0
    %v743 = vadd.f32 %v672, %v742
    %744 = vdwg.mxu0
    %745 = vmatprep.subr.mxu0 0.0
    %746 = vmatpush1.msra.mxu0 %v444
    %747 = vmatprep.subr.mxu0 0.0
    %748 = vmatpush1.msra.mxu0 %v447
    %749 = vmatprep.subr.mxu0 0.0
    %750 = vmatpush1.msra.mxu0 %v450
    %751 = vmatprep.subr.mxu0 0.0
    %752 = vmatpush1.msra.mxu0 %v453
    %753 = vmatprep.subr.mxu0 0.0
    %754 = vmatpush1.msra.mxu0 %v456
    %755 = vmatprep.subr.mxu0 0.0
    %756 = vmatpush1.msra.mxu0 %v459
    %757 = vmatprep.subr.mxu0 0.0
    %758 = vmatpush1.msra.mxu0 %v462
    %759 = vmatprep.subr.mxu0 0.0
    %760 = vmatpush1.msra.mxu0 %v465
    %761 = vmatprep.subr.mxu0 0.0
    %762 = vmatpush1.msra.mxu0 %v468
    %763 = vmatprep.subr.mxu0 0.0
    %764 = vmatpush1.msra.mxu0 %v471
    %765 = vmatprep.subr.mxu0 0.0
    %766 = vmatpush1.msra.mxu0 %v474
    %767 = vmatprep.subr.mxu0 0.0
    %768 = vmatpush1.msra.mxu0 %v477
    %769 = vmatprep.subr.mxu0 0.0
    %770 = vmatpush1.msra.mxu0 %v480
    %771 = vmatprep.subr.mxu0 0.0
    %772 = vmatpush1.msra.mxu0 %v483
    %773 = vmatprep.subr.mxu0 0.0
    %774 = vmatpush1.msra.mxu0 %v486
    %775 = vmatprep.subr.mxu0 0.0
    %776 = vmatpush1.msra.mxu0 %v489
    %777 = vmatprep.subr.mxu0 0.0
    %778 = vmatpush1.msra.mxu0 %v492
    %779 = vmatprep.subr.mxu0 0.0
    %780 = vmatpush1.msra.mxu0 %v495
    %781 = vmatprep.subr.mxu0 0.0
    %782 = vmatpush1.msra.mxu0 %v498
    %783 = vmatprep.subr.mxu0 0.0
    %784 = vmatpush1.msra.mxu0 %v501
    %785 = vmatprep.subr.mxu0 0.0
    %786 = vmatpush1.msra.mxu0 %v504
    %787 = vmatprep.subr.mxu0 0.0
    %788 = vmatpush1.msra.mxu0 %v507
    %789 = vmatprep.subr.mxu0 0.0
    %790 = vmatpush1.msra.mxu0 %v510
    %791 = vmatprep.subr.mxu0 0.0
    %792 = vmatpush1.msra.mxu0 %v513
    %793 = vmatprep.subr.mxu0 0.0
    %794 = vmatpush1.msra.mxu0 %v516
    %795 = vmatprep.subr.mxu0 0.0
    %796 = vmatpush1.msra.mxu0 %v519
    %797 = vmatprep.subr.mxu0 0.0
    %798 = vmatpush1.msra.mxu0 %v522
    %799 = vmatprep.subr.mxu0 0.0
    %800 = vmatpush1.msra.mxu0 %v525
    %801 = vmatprep.subr.mxu0 0.0
    %802 = vmatpush1.msra.mxu0 %v528
    %803 = vmatprep.subr.mxu0 0.0
    %804 = vmatpush1.msra.mxu0 %v531
    %805 = vmatprep.subr.mxu0 0.0
    %806 = vmatpush1.msra.mxu0 %v534
    %807 = vmatprep.subr.mxu0 0.0
    %808 = vmatpush1.msra.mxu0 %v537
    %809 = vmatprep.mubr.f32.mxu0 %v440
    %810 = vmatmul.mubr.f32.gmra.mrb[0].mxu0 %v439
    %v811 = vpop.f32.mrb[0].mxu0
    %v812 = vadd.f32 %v599, %v811
    %v813 = vpop.f32.mrb[0].mxu0
    %814 = vdwg.mxu0
    %815 = vmatprep.subr.mxu0 0.0
    %816 = vmatpush1.msra.mxu0 %v540
    %817 = vmatprep.subr.mxu0 0.0
    %818 = vmatpush1.msra.mxu0 %v543
    %819 = vmatprep.subr.mxu0 0.0
    %820 = vmatpush1.msra.mxu0 %v546
    %821 = vmatprep.subr.mxu0 0.0
    %822 = vmatpush1.msra.mxu0 %v549
    %823 = vmatprep.subr.mxu0 0.0
    %824 = vmatpush1.msra.mxu0 %v552
    %825 = vmatprep.subr.mxu0 0.0
    %826 = vmatpush1.msra.mxu0 %v555
    %827 = vmatprep.subr.mxu0 0.0
    %828 = vmatpush1.msra.mxu0 %v558
    %829 = vmatprep.subr.mxu0 0.0
    %830 = vmatpush1.msra.mxu0 %v561
    %831 = vmatprep.subr.mxu0 0.0
    %832 = vmatpush1.msra.mxu0 %v564
    %833 = vmatprep.subr.mxu0 0.0
    %834 = vmatpush1.msra.mxu0 %v567
    %835 = vmatprep.subr.mxu0 0.0
    %836 = vmatpush1.msra.mxu0 %v570
    %837 = vmatprep.subr.mxu0 0.0
    %838 = vmatpush1.msra.mxu0 %v573
    %839 = vmatprep.subr.mxu0 0.0
    %840 = vmatpush1.msra.mxu0 %v576
    %841 = vmatprep.subr.mxu0 0.0
    %842 = vmatpush1.msra.mxu0 %v579
    %843 = vmatprep.subr.mxu0 0.0
    %844 = vmatpush1.msra.mxu0 %v582
    %845 = vmatprep.subr.mxu0 0.0
    %846 = vmatpush1.msra.mxu0 %v585
    %847 = vmatprep.subr.mxu0 0.0
    %848 = vmatpush1.msra.mxu0 0.0
    %849 = vmatprep.subr.mxu0 0.0
    %850 = vmatpush1.msra.mxu0 0.0
    %851 = vmatprep.subr.mxu0 0.0
    %852 = vmatpush1.msra.mxu0 0.0
    %853 = vmatprep.subr.mxu0 0.0
    %854 = vmatpush1.msra.mxu0 0.0
    %855 = vmatprep.subr.mxu0 0.0
    %856 = vmatpush1.msra.mxu0 0.0
    %857 = vmatprep.subr.mxu0 0.0
    %858 = vmatpush1.msra.mxu0 0.0
    %859 = vmatprep.subr.mxu0 0.0
    %860 = vmatpush1.msra.mxu0 0.0
    %861 = vmatprep.subr.mxu0 0.0
    %862 = vmatpush1.msra.mxu0 0.0
    %863 = vmatprep.subr.mxu0 0.0
    %864 = vmatpush1.msra.mxu0 0.0
    %865 = vmatprep.subr.mxu0 0.0
    %866 = vmatpush1.msra.mxu0 0.0
    %867 = vmatprep.subr.mxu0 0.0
    %868 = vmatpush1.msra.mxu0 0.0
    %869 = vmatprep.subr.mxu0 0.0
    %870 = vmatpush1.msra.mxu0 0.0
    %871 = vmatprep.subr.mxu0 0.0
    %872 = vmatpush1.msra.mxu0 0.0
    %873 = vmatprep.subr.mxu0 0.0
    %874 = vmatpush1.msra.mxu0 0.0
    %875 = vmatprep.subr.mxu0 0.0
    %876 = vmatpush1.msra.mxu0 0.0
    %877 = vmatprep.subr.mxu0 0.0
    %878 = vmatpush1.msra.mxu0 0.0
    %879 = vmatprep.mubr.f32.mxu0 0.0
    %880 = vmatmul.mubr.f32.gmra.mrb[0].mxu0 %v441
    %v881 = vpop.f32.mrb[0].mxu0
    %v882 = vadd.f32 %v812, %v881
    %v883 = vpop.f32.mrb[0].mxu0
    %884 = vdwg.mxu0
    %v885 = vmax.f32 %v741, 0.0
    %v886 = vmax.f32 %v743, 0.0
    %v887 = vmax.f32 %v882, 0.0
    %v888 = vld [vmem:[#allocation11] sm:$0xff]
    %v889 = vld [vmem:[#allocation11 + $0x8] sm:$0xff]
    %v890 = vld [vmem:[#allocation11 + $0x10] sm:$0xff]
    %v891 = vld [vmem:[#allocation11 + $0x18] sm:$0xff]
    %v892 = vld [vmem:[#allocation11 + $0x20] sm:$0xff]
    %v893 = vld [vmem:[#allocation11 + $0x28] sm:$0xff]
    %v894 = vld [vmem:[#allocation11 + $0x30] sm:$0xff]
    %v895 = vld [vmem:[#allocation11 + $0x38] sm:$0xff]
    %v896 = vld [vmem:[#allocation11 + $0x40] sm:$0xff]
    %v897 = vld [vmem:[#allocation11 + $0x48] sm:$0xff]
    %v898 = vld [vmem:[#allocation11 + $0x50] sm:$0xff]
    %v899 = vld [vmem:[#allocation11 + $0x58] sm:$0xff]
    %v900 = vld [vmem:[#allocation11 + $0x60] sm:$0xff]
    %v901 = vld [vmem:[#allocation11 + $0x68] sm:$0xff]
    %v902 = vld [vmem:[#allocation11 + $0x70] sm:$0xff]
    %v903 = vld [vmem:[#allocation11 + $0x78] sm:$0xff]
    %v904 = vld [vmem:[#allocation11 + $0x80] sm:$0xff]
    %v905 = vld [vmem:[#allocation11 + $0x88] sm:$0xff]
    %v906 = vld [vmem:[#allocation11 + $0x90] sm:$0xff]
    %v907 = vld [vmem:[#allocation11 + $0x98] sm:$0xff]
    %v908 = vld [vmem:[#allocation11 + $0xa0] sm:$0xff]
    %v909 = vld [vmem:[#allocation11 + $0xa8] sm:$0xff]
    %v910 = vld [vmem:[#allocation11 + $0xb0] sm:$0xff]
    %v911 = vld [vmem:[#allocation11 + $0xb8] sm:$0xff]
    %v912 = vld [vmem:[#allocation11 + $0xc0] sm:$0xff]
    %v913 = vld [vmem:[#allocation11 + $0xc8] sm:$0xff]
    %v914 = vld [vmem:[#allocation11 + $0xd0] sm:$0xff]
    %v915 = vld [vmem:[#allocation11 + $0xd8] sm:$0xff]
    %v916 = vld [vmem:[#allocation11 + $0xe0] sm:$0xff]
    %v917 = vld [vmem:[#allocation11 + $0xe8] sm:$0xff]
    %v918 = vld [vmem:[#allocation11 + $0xf0] sm:$0xff]
    %v919 = vld [vmem:[#allocation11 + $0xf8] sm:$0xff]
    %v920 = vld [vmem:[#allocation11 + $0x100] sm:$0xff]
    %v921 = vld [vmem:[#allocation11 + $0x108] sm:$0xff]
    %v922 = vld [vmem:[#allocation11 + $0x110] sm:$0xff]
    %v923 = vld [vmem:[#allocation11 + $0x118] sm:$0xff]
    %v924 = vld [vmem:[#allocation11 + $0x120] sm:$0xff]
    %v925 = vld [vmem:[#allocation11 + $0x128] sm:$0xff]
    %v926 = vld [vmem:[#allocation11 + $0x130] sm:$0xff]
    %v927 = vld [vmem:[#allocation11 + $0x138] sm:$0xff]
    %v928 = vld [vmem:[#allocation11 + $0x140] sm:$0xff]
    %v929 = vld [vmem:[#allocation11 + $0x148] sm:$0xff]
    %v930 = vld [vmem:[#allocation11 + $0x150] sm:$0xff]
    %v931 = vld [vmem:[#allocation11 + $0x158] sm:$0xff]
    %v932 = vld [vmem:[#allocation11 + $0x160] sm:$0xff]
    %v933 = vld [vmem:[#allocation11 + $0x168] sm:$0xff]
    %v934 = vld [vmem:[#allocation11 + $0x170] sm:$0xff]
    %v935 = vld [vmem:[#allocation11 + $0x178] sm:$0xff]
    %v936 = vld [vmem:[%s8] sm:$0x1]
    %v938 = vlaneseq
    %v939 = vshrl.u32 %v938, 7
    %v940 = vsub.s32 0, %v939
    %v941 = vrot.slane %v936, %v940
    %943 = vmatprep.subr.mxu0 0.0
    %944 = vmatpush1.msra.mxu0 %v888
    %945 = vmatprep.subr.mxu0 0.0
    %946 = vmatpush1.msra.mxu0 %v889
    %947 = vmatprep.subr.mxu0 0.0
    %948 = vmatpush1.msra.mxu0 %v890
    %949 = vmatprep.subr.mxu0 0.0
    %950 = vmatpush1.msra.mxu0 %v891
    %951 = vmatprep.subr.mxu0 0.0
    %952 = vmatpush1.msra.mxu0 %v892
    %953 = vmatprep.subr.mxu0 0.0
    %954 = vmatpush1.msra.mxu0 %v893
    %955 = vmatprep.subr.mxu0 0.0
    %956 = vmatpush1.msra.mxu0 %v894
    %957 = vmatprep.subr.mxu0 0.0
    %958 = vmatpush1.msra.mxu0 %v895
    %959 = vmatprep.subr.mxu0 0.0
    %960 = vmatpush1.msra.mxu0 %v896
    %961 = vmatprep.subr.mxu0 0.0
    %962 = vmatpush1.msra.mxu0 %v897
    %963 = vmatprep.subr.mxu0 0.0
    %964 = vmatpush1.msra.mxu0 %v898
    %965 = vmatprep.subr.mxu0 0.0
    %966 = vmatpush1.msra.mxu0 %v899
    %967 = vmatprep.subr.mxu0 0.0
    %968 = vmatpush1.msra.mxu0 %v900
    %969 = vmatprep.subr.mxu0 0.0
    %970 = vmatpush1.msra.mxu0 %v901
    %971 = vmatprep.subr.mxu0 0.0
    %972 = vmatpush1.msra.mxu0 %v902
    %973 = vmatprep.subr.mxu0 0.0
    %974 = vmatpush1.msra.mxu0 %v903
    %975 = vmatprep.subr.mxu0 0.0
    %976 = vmatpush1.msra.mxu0 %v904
    %977 = vmatprep.subr.mxu0 0.0
    %978 = vmatpush1.msra.mxu0 %v905
    %979 = vmatprep.subr.mxu0 0.0
    %980 = vmatpush1.msra.mxu0 %v906
    %981 = vmatprep.subr.mxu0 0.0
    %982 = vmatpush1.msra.mxu0 %v907
    %983 = vmatprep.subr.mxu0 0.0
    %984 = vmatpush1.msra.mxu0 %v908
    %985 = vmatprep.subr.mxu0 0.0
    %986 = vmatpush1.msra.mxu0 %v909
    %987 = vmatprep.subr.mxu0 0.0
    %988 = vmatpush1.msra.mxu0 %v910
    %989 = vmatprep.subr.mxu0 0.0
    %990 = vmatpush1.msra.mxu0 %v911
    %991 = vmatprep.subr.mxu0 0.0
    %992 = vmatpush1.msra.mxu0 %v912
    %993 = vmatprep.subr.mxu0 0.0
    %994 = vmatpush1.msra.mxu0 %v913
    %995 = vmatprep.subr.mxu0 0.0
    %996 = vmatpush1.msra.mxu0 %v914
    %997 = vmatprep.subr.mxu0 0.0
    %998 = vmatpush1.msra.mxu0 %v915
    %999 = vmatprep.subr.mxu0 0.0
    %1000 = vmatpush1.msra.mxu0 %v916
    %1001 = vmatprep.subr.mxu0 0.0
    %1002 = vmatpush1.msra.mxu0 %v917
    %1003 = vmatprep.subr.mxu0 0.0
    %1004 = vmatpush1.msra.mxu0 %v918
    %1005 = vmatprep.subr.mxu0 0.0
    %1006 = vmatpush1.msra.mxu0 %v919
    %1007 = vmatprep.mubr.f32.mxu0 %v886
    %1008 = vmatmul.mubr.f32.gmra.mrb[0].mxu0 %v885
    %v1009 = vpop.f32.mrb[0].mxu0
    %v1010 = vadd.f32 %v941, %v1009
    %v1011 = vpop.f32.mrb[0].mxu0
    %1012 = vdwg.mxu0
    %1013 = vmatprep.subr.mxu0 0.0
    %1014 = vmatpush1.msra.mxu0 %v920
    %1015 = vmatprep.subr.mxu0 0.0
    %1016 = vmatpush1.msra.mxu0 %v921
    %1017 = vmatprep.subr.mxu0 0.0
    %1018 = vmatpush1.msra.mxu0 %v922
    %1019 = vmatprep.subr.mxu0 0.0
    %1020 = vmatpush1.msra.mxu0 %v923
    %1021 = vmatprep.subr.mxu0 0.0
    %1022 = vmatpush1.msra.mxu0 %v924
    %1023 = vmatprep.subr.mxu0 0.0
    %1024 = vmatpush1.msra.mxu0 %v925
    %1025 = vmatprep.subr.mxu0 0.0
    %1026 = vmatpush1.msra.mxu0 %v926
    %1027 = vmatprep.subr.mxu0 0.0
    %1028 = vmatpush1.msra.mxu0 %v927
    %1029 = vmatprep.subr.mxu0 0.0
    %1030 = vmatpush1.msra.mxu0 %v928
    %1031 = vmatprep.subr.mxu0 0.0
    %1032 = vmatpush1.msra.mxu0 %v929
    %1033 = vmatprep.subr.mxu0 0.0
    %1034 = vmatpush1.msra.mxu0 %v930
    %1035 = vmatprep.subr.mxu0 0.0
    %1036 = vmatpush1.msra.mxu0 %v931
    %1037 = vmatprep.subr.mxu0 0.0
    %1038 = vmatpush1.msra.mxu0 %v932
    %1039 = vmatprep.subr.mxu0 0.0
    %1040 = vmatpush1.msra.mxu0 %v933
    %1041 = vmatprep.subr.mxu0 0.0
    %1042 = vmatpush1.msra.mxu0 %v934
    %1043 = vmatprep.subr.mxu0 0.0
    %1044 = vmatpush1.msra.mxu0 %v935
    %1045 = vmatprep.subr.mxu0 0.0
    %1046 = vmatpush1.msra.mxu0 0.0
    %1047 = vmatprep.subr.mxu0 0.0
    %1048 = vmatpush1.msra.mxu0 0.0
    %1049 = vmatprep.subr.mxu0 0.0
    %1050 = vmatpush1.msra.mxu0 0.0
    %1051 = vmatprep.subr.mxu0 0.0
    %1052 = vmatpush1.msra.mxu0 0.0
    %1053 = vmatprep.subr.mxu0 0.0
    %1054 = vmatpush1.msra.mxu0 0.0
    %1055 = vmatprep.subr.mxu0 0.0
    %1056 = vmatpush1.msra.mxu0 0.0
    %1057 = vmatprep.subr.mxu0 0.0
    %1058 = vmatpush1.msra.mxu0 0.0
    %1059 = vmatprep.subr.mxu0 0.0
    %1060 = vmatpush1.msra.mxu0 0.0
    %1061 = vmatprep.subr.mxu0 0.0
    %1062 = vmatpush1.msra.mxu0 0.0
    %1063 = vmatprep.subr.mxu0 0.0
    %1064 = vmatpush1.msra.mxu0 0.0
    %1065 = vmatprep.subr.mxu0 0.0
    %1066 = vmatpush1.msra.mxu0 0.0
    %1067 = vmatprep.subr.mxu0 0.0
    %1068 = vmatpush1.msra.mxu0 0.0
    %1069 = vmatprep.subr.mxu0 0.0
    %1070 = vmatpush1.msra.mxu0 0.0
    %1071 = vmatprep.subr.mxu0 0.0
    %1072 = vmatpush1.msra.mxu0 0.0
    %1073 = vmatprep.subr.mxu0 0.0
    %1074 = vmatpush1.msra.mxu0 0.0
    %1075 = vmatprep.subr.mxu0 0.0
    %1076 = vmatpush1.msra.mxu0 0.0
    %1077 = vmatprep.mubr.f32.mxu0 0.0
    %1078 = vmatmul.mubr.f32.gmra.mrb[0].mxu0 %v887
    %v1079 = vpop.f32.mrb[0].mxu0
    %v1080 = vadd.f32 %v1010, %v1079
    %v1081 = vpop.f32.mrb[0].mxu0
    %1082 = vdwg.mxu0
    %1083 = vst [vmem:[#allocation13] sm:$0x3] %v1080
    // Predicated region
    $region62: #{tpu_custom_call.1} parent=1 // pred_check
      _
    $region63: #{tpu_custom_call.1} parent=1 // pred_check_branch
      %1085 = sbr.rel (0) target = $region65
    $region64: #{tpu_custom_call.1} parent=1 // pred_region
      %s1087 = ssub.s32 32, 32
      %1088 = vsyncadd [#allocation4], %s1087
      %s1090 = sshll.u32 [#allocation13], 4
      %s1091 = int_to_ptr.vmem [resolvable:$true] %s1090
      %1093 = dma.vmem_to_hbm [thread:$0]  %s1091, 32, %s9, [#allocation4]
    $region65: #{tpu_custom_call.1} parent=1 // pred_fallthru
      _
    // Predicated region
    $region66: #{tpu_custom_call.1} parent=1 // pred_check
      _
    $region67: #{tpu_custom_call.1} parent=1 // pred_check_branch
      %1095 = sbr.rel (0) target = $region69
    $region68: #{tpu_custom_call.1} parent=1 // pred_region
      %1096 = dma.done [#allocation4], 32
    $region69: #{tpu_custom_call.1} parent=1 // pred_fallthru
      _
    %1097 = vsyncpa [#allocation3], 1
    %1098 = vsyncpa [#allocation6], 1
    %1099 = vsyncpa [#allocation9], 1
    %1100 = vsyncpa [#allocation12], 1
    %1101 = vsyncpa [#allocation4], 1

</llo_original>
